<compile_context>
chip_gen: v6e
topology: v6e:2x2x1
jax: 0.10.0
libtpu: 0.0.40
codegen_flags: <defaults>
</compile_context>

<pallas_src>
import functools
import math

import jax
import jax.numpy as jnp
from jax.experimental import pallas as pl
from jax.experimental.pallas import tpu as pltpu


# ---------------------------------------------------------------------------
# 1) Tiled matmul (QKV projection and output projection)
# ---------------------------------------------------------------------------
def _matmul_kernel_f32(a_ref, b_ref, o_ref):
    # f32 output: accumulate directly into the resident output block (no scratch).
    @pl.when(pl.program_id(2) == 0)
    def _():
        o_ref[...] = jnp.zeros_like(o_ref)

    o_ref[...] += jnp.dot(a_ref[...], b_ref[...],
                          preferred_element_type=jnp.float32)


def _matmul_kernel_acc(a_ref, b_ref, o_ref, acc_ref):
    # non-f32 output: f32 VMEM accumulator, single cast/store on the last K step.
    @pl.when(pl.program_id(2) == 0)
    def _():
        acc_ref[...] = jnp.zeros_like(acc_ref)

    acc_ref[...] += jnp.dot(a_ref[...], b_ref[...],
                            preferred_element_type=jnp.float32)

    @pl.when(pl.program_id(2) == pl.num_programs(2) - 1)
    def _():
        o_ref[...] = acc_ref[...].astype(o_ref.dtype)


def matmul(a, b, *, tm=256, tn=512, tk=1024, out_dtype=None):
    """a: (M, K), b: (K, N) -> (M, N).  Tiles clamped to the array dims."""
    M, K = a.shape
    K2, N = b.shape
    assert K == K2
    out_dtype = out_dtype or a.dtype
    tm, tn, tk = min(tm, M), min(tn, N), min(tk, K)
    # TODO(synk): ragged shapes need cdiv grids + edge masking.
    assert M % tm == 0 and N % tn == 0 and K % tk == 0

    if jnp.dtype(out_dtype) == jnp.dtype(jnp.float32):
        kernel, scratch = _matmul_kernel_f32, []
    else:
        kernel, scratch = _matmul_kernel_acc, [pltpu.VMEM((tm, tn), jnp.float32)]

    return pl.pallas_call(
        kernel,
        out_shape=jax.ShapeDtypeStruct((M, N), out_dtype),
        grid_spec=pltpu.PrefetchScalarGridSpec(
            num_scalar_prefetch=0,
            grid=(M // tm, N // tn, K // tk),          # reduction (K) axis last
            in_specs=[
                pl.BlockSpec((tm, tk), lambda i, j, k: (i, k)),
                pl.BlockSpec((tk, tn), lambda i, j, k: (k, j)),
            ],
            out_specs=pl.BlockSpec((tm, tn), lambda i, j, k: (i, j)),
            scratch_shapes=scratch,
        ),
        compiler_params=pltpu.CompilerParams(
            dimension_semantics=("parallel", "parallel", "arbitrary"),
            vmem_limit_bytes=48 * 1024 * 1024),
    )(a, b)


# ---------------------------------------------------------------------------
# 2) Causal flash attention with fused rotate-half RoPE, reading q/k/v tiles
#    straight out of the fused qkv activation, writing (B*S, dim) directly.
# ---------------------------------------------------------------------------
def _rope_tile(x_ref, cos_ref, sin_ref):
    """Rotate-half RoPE on a (t, D) tile (channels already de-interleaved)."""
    xf = x_ref[...].astype(jnp.float32)
    half = xf.shape[-1] // 2
    # half-swap == roll by D/2; pltpu.roll(xf, half, axis=1) is the XLU-native form.
    rot = jnp.concatenate([xf[:, half:], xf[:, :half]], axis=1)
    out = xf * cos_ref[...] + rot * sin_ref[...]
    return out.astype(x_ref.dtype)          # back to input dtype (bf16 MXU path kept)


def _flash_attn_kernel(q_ref, k_ref, v_ref, cq_ref, sq_ref, ck_ref, sk_ref,
                       o_ref, m_ref, l_ref, acc_ref, *, scale):
    qi = pl.program_id(1)
    ki = pl.program_id(2)
    tq = q_ref.shape[0]
    tk = k_ref.shape[0]

    @pl.when(ki == 0)
    def _():
        m_ref[...] = jnp.full_like(m_ref, -1e30)
        l_ref[...] = jnp.zeros_like(l_ref)
        acc_ref[...] = jnp.zeros_like(acc_ref)

    def step(apply_mask: bool):
        q = _rope_tile(q_ref, cq_ref, sq_ref)          # (tq, D)
        k = _rope_tile(k_ref, ck_ref, sk_ref)          # (tk, D)
        s = jax.lax.dot_general(q, k, (((1,), (1,)), ((), ())),
                                preferred_element_type=jnp.float32) * scale
        if apply_mask:                                  # only on diagonal tiles
            q_idx = qi * tq + jax.lax.broadcasted_iota(jnp.int32, (tq, tk), 0)
            k_idx = ki * tk + jax.lax.broadcasted_iota(jnp.int32, (tq, tk), 1)
            s = jnp.where(k_idx <= q_idx, s, -1e30)
        m_prev = m_ref[...]
        m_new = jnp.maximum(m_prev, s.max(axis=-1, keepdims=True))
        alpha = jnp.exp(m_prev - m_new)
        p = jnp.exp(s - m_new)
        l_ref[...] = alpha * l_ref[...] + p.sum(axis=-1, keepdims=True)
        acc_ref[...] = alpha * acc_ref[...] + jnp.dot(
            p.astype(v_ref.dtype), v_ref[...], preferred_element_type=jnp.float32)
        m_ref[...] = m_new

    q_lo = qi * tq
    q_hi = q_lo + tq - 1
    k_lo = ki * tk
    k_hi = k_lo + tk - 1

    @pl.when(k_hi <= q_lo)                      # fully in the past: no mask needed
    def _():
        step(apply_mask=False)

    @pl.when((k_hi > q_lo) & (k_lo <= q_hi))    # straddles the diagonal: masked
    def _():
        step(apply_mask=True)

    # Fully-future tiles (k_lo > q_hi): no compute, and the k/v index maps clamp
    # to the diagonal block so no fresh DMA is issued for them either.

    @pl.when(ki == pl.num_programs(2) - 1)
    def _():
        # exact divide keeps the reference check tight; pl.reciprocal(..., approx=True)
        # is the cheaper EUP option for bf16 production.
        o_ref[...] = (acc_ref[...] / l_ref[...]).astype(o_ref.dtype)


def flash_attention(qkv, cos_rep, sin_signed, *, B, S, n_head, n_kv_head, head_dim,
                    tq=256, tk=512):
    """qkv: (B*S, (n_head + 2*n_kv_head)*head_dim) de-interleaved-q/k layout.
    Returns attention output in (B*S, n_head*head_dim) layout (heads merged)."""
    assert head_dim % 128 == 0, "column-tiled layout needs lane-dense heads"
    rep = n_head // n_kv_head
    M = B * S
    dim = n_head * head_dim
    tq, tk = min(tq, S), min(tk, S)
    assert S % tq == 0 and S % tk == 0
    q_tiles, k_tiles = S // tq, S // tk
    scale = 1.0 / math.sqrt(head_dim)

    def q_map(b, i, j):
        # row block inside (M, ...) for this batch's q tile; column block = head.
        return (b // n_head) * q_tiles + i, b % n_head

    def kv_map(col0):
        def m(b, i, j):
            # clamp fully-masked future kv tiles onto the diagonal tile (skip DMA)
            j_eff = jnp.minimum(j, (i * tq + tq - 1) // tk)
            # GQA: q head -> its kv head, read straight from the fused qkv columns
            return (b // n_head) * k_tiles + j_eff, col0 + (b % n_head) // rep
        return m

    def cos_q_map(b, i, j):
        return i, 0

    def cos_k_map(b, i, j):
        return jnp.minimum(j, (i * tq + tq - 1) // tk), 0

    kernel = functools.partial(_flash_attn_kernel, scale=scale)
    return pl.pallas_call(
        kernel,
        out_shape=jax.ShapeDtypeStruct((M, dim), qkv.dtype),
        grid_spec=pltpu.PrefetchScalarGridSpec(
            num_scalar_prefetch=0,
            grid=(B * n_head, q_tiles, k_tiles),        # kv (reduction) axis last
            in_specs=[
                pl.BlockSpec((tq, head_dim), q_map),                       # q tile
                pl.BlockSpec((tk, head_dim), kv_map(n_head)),              # k tile
                pl.BlockSpec((tk, head_dim), kv_map(n_head + n_kv_head)),  # v tile
                pl.BlockSpec((tq, head_dim), cos_q_map),                   # cos (q rows)
                pl.BlockSpec((tq, head_dim), cos_q_map),                   # sin (q rows)
                pl.BlockSpec((tk, head_dim), cos_k_map),                   # cos (k rows)
                pl.BlockSpec((tk, head_dim), cos_k_map),                   # sin (k rows)
            ],
            out_specs=pl.BlockSpec((tq, head_dim), q_map),
            scratch_shapes=[
                pltpu.VMEM((tq, 1), jnp.float32),          # running max m
                pltpu.VMEM((tq, 1), jnp.float32),          # running denom l
                pltpu.VMEM((tq, head_dim), jnp.float32),   # output accumulator
            ],
        ),
        compiler_params=pltpu.CompilerParams(
            dimension_semantics=("parallel", "parallel", "arbitrary"),
            vmem_limit_bytes=48 * 1024 * 1024),
    )(qkv, qkv, qkv, cos_rep, sin_signed, cos_rep, sin_signed)


# ---------------------------------------------------------------------------
# One-time weight-load transform: fold the per-head (x0,x1) de-interleave of q/k
# into Wqkv's columns so the projection emits the rotate-half channel layout.
# (A pure permutation applied identically to q and k; q.k^T — and hence the
#  attention output — is unchanged.  V columns and Wo are untouched.)
# ---------------------------------------------------------------------------
def fold_deinterleave_into_wqkv(wqkv, *, n_head, n_kv_head, head_dim):
    dim_q = n_head * head_dim
    kv = n_kv_head * head_dim

    def perm_cols(w_cols, n_h):
        w = w_cols.reshape(-1, n_h, head_dim // 2, 2)
        w = jnp.concatenate([w[..., 0], w[..., 1]], axis=-1)   # (in, n_h, hd)
        return w.reshape(-1, n_h * head_dim)

    wq = perm_cols(wqkv[:, :dim_q], n_head)
    wk = perm_cols(wqkv[:, dim_q:dim_q + kv], n_kv_head)
    wv = wqkv[:, dim_q + kv:]
    return jnp.concatenate([wq, wk, wv], axis=-1)


# ---------------------------------------------------------------------------
# Full Attention.forward (prefill path, eval mode)
# ---------------------------------------------------------------------------
def attention_forward(x, wqkv_folded, wo, freqs_cis, *, n_head, n_kv_head,
                      q_tile=256, kv_tile=512):
    B, S, dim = x.shape
    head_dim = dim // n_head
    M = B * S

    # --- fused QKV projection (columns already de-interleaved for q/k) -----------
    qkv = matmul(x.reshape(M, dim), wqkv_folded)     # (M, (n_head+2*n_kv)*hd)

    # --- rotate-half RoPE tables (f32) -------------------------------------------
    cos = freqs_cis[..., 0].astype(jnp.float32)      # (S, head_dim//2)
    sin = freqs_cis[..., 1].astype(jnp.float32)
    cos_rep = jnp.concatenate([cos, cos], axis=-1)   # (S, head_dim)
    sin_signed = jnp.concatenate([-sin, sin], axis=-1)

    # --- fused RoPE + causal flash attention, output already (M, dim) ------------
    o = flash_attention(qkv, cos_rep, sin_signed, B=B, S=S,
                        n_head=n_head, n_kv_head=n_kv_head, head_dim=head_dim,
                        tq=q_tile, tk=kv_tile)

    # --- output projection --------------------------------------------------------
    out = matmul(o, wo)
    # TODO(synk): attn_dropout / resid_dropout are identity in eval; kv_cache update
    # (decode path) is not exercised by this prefill forward.
    return out.reshape(B, S, dim)


# ---------------------------------------------------------------------------
# Pure-JAX reference (faithful to the PyTorch module, uses the ORIGINAL wqkv)
# ---------------------------------------------------------------------------
def reference_attention(x, wqkv, wo, freqs_cis, *, n_head, n_kv_head):
    B, S, dim = x.shape
    head_dim = dim // n_head
    kv_size = n_kv_head * head_dim
    qkv = x @ wqkv
    xq = qkv[..., :dim].reshape(B, S, n_head, head_dim)
    xk = qkv[..., dim:dim + kv_size].reshape(B, S, n_kv_head, head_dim)
    xv = qkv[..., dim + kv_size:].reshape(B, S, n_kv_head, head_dim)

    def rope(t):
        ts = t.astype(jnp.float32).reshape(*t.shape[:-1], head_dim // 2, 2)
        fc = freqs_cis.reshape(1, S, 1, head_dim // 2, 2)
        o = jnp.stack([ts[..., 0] * fc[..., 0] - ts[..., 1] * fc[..., 1],
                       ts[..., 1] * fc[..., 0] + ts[..., 0] * fc[..., 1]], axis=-1)
        return o.reshape(t.shape).astype(t.dtype)

    xq, xk = rope(xq), rope(xk)
    xq = xq.transpose(0, 2, 1, 3)
    xk = xk.transpose(0, 2, 1, 3)
    xv = xv.transpose(0, 2, 1, 3)
    rep = n_head // n_kv_head
    xk = jnp.repeat(xk, rep, axis=1)
    xv = jnp.repeat(xv, rep, axis=1)
    scores = jnp.einsum("bhqd,bhkd->bhqk", xq, xk) / math.sqrt(head_dim)
    mask = jnp.tril(jnp.ones((S, S), dtype=bool))
    scores = jnp.where(mask, scores, -jnp.inf)
    probs = jax.nn.softmax(scores, axis=-1)
    o = jnp.einsum("bhqk,bhkd->bhqd", probs, xv)
    o = o.transpose(0, 2, 1, 3).reshape(B, S, dim)
    return o @ wo


if __name__ == "__main__":
    # Small ModelArgs-consistent shapes: dim=256, n_head=2, n_kv_head=1 (GQA, rep=2),
    # head_dim=128, batch=2, seq=32.  Flash tiles 16x16 -> 2x2 kv grid so the masked
    # (diagonal), unmasked (past) and skipped/clamped (future) tile paths all run.
    dim, n_head, n_kv_head = 256, 2, 1
    head_dim = dim // n_head
    B, S = 2, 32
    total_kv_dim = (n_head + 2 * n_kv_head) * head_dim

    key = jax.random.PRNGKey(0)
    kx, kw1, kw2 = jax.random.split(key, 3)
    std = 0.02
    x = jax.random.normal(kx, (B, S, dim), dtype=jnp.float32)
    # weights stored as (in_features, out_features), i.e. nn.Linear.weight.T
    wqkv = (std * jax.random.normal(kw1, (dim, total_kv_dim))).astype(jnp.float32)
    wo = (std * jax.random.normal(kw2, (dim, dim))).astype(jnp.float32)

    # rotary cache: (S, head_dim//2, 2) with [...,0]=cos, [...,1]=sin, base=10000
    half = head_dim // 2
    inv_freq = 1.0 / (10000.0 ** (jnp.arange(0, half, dtype=jnp.float32) / half))
    t = jnp.arange(S, dtype=jnp.float32)
    angles = jnp.outer(t, inv_freq)
    freqs_cis = jnp.stack([jnp.cos(angles), jnp.sin(angles)], axis=-1)

    # one-time weight-load transform (free at runtime)
    wqkv_folded = fold_deinterleave_into_wqkv(
        wqkv, n_head=n_head, n_kv_head=n_kv_head, head_dim=head_dim)

    out = attention_forward(x, wqkv_folded, wo, freqs_cis,
                            n_head=n_head, n_kv_head=n_kv_head,
                            q_tile=16, kv_tile=16)
    out = jax.block_until_ready(out)

    ref = reference_attention(x, wqkv, wo, freqs_cis,
                              n_head=n_head, n_kv_head=n_kv_head)
    assert out.shape == (B, S, dim)
    assert jnp.allclose(out, ref, atol=1e-4, rtol=1e-4), \
        float(jnp.max(jnp.abs(out - ref)))
    print("KERNEL_OK")
</pallas_src>

<mosaic_0001>
module attributes {stable_mosaic.version = 11 : i64} {
  func.func @_matmul_kernel_f32(%arg0: i32, %arg1: i32, %arg2: i32, %arg3: memref<64x256xf32, #tpu.memory_space<vmem>>, %arg4: memref<256x512xf32, #tpu.memory_space<vmem>>, %arg5: memref<64x512xf32, #tpu.memory_space<vmem>>) attributes {dimension_semantics = [#tpu.dimension_semantics<parallel>, #tpu.dimension_semantics<parallel>, #tpu.dimension_semantics<arbitrary>], iteration_bounds = array<i64: 1, 1, 1>, scalar_prefetch = 0 : i64, scratch_operands = 0 : i64, tpu.core_type = #tpu.core_type<tc>, window_params = [{transform_indices = @transform_0, window_bounds = array<i64: 64, 256>}, {transform_indices = @transform_1, window_bounds = array<i64: 256, 512>}, {transform_indices = @transform_2, window_bounds = array<i64: 64, 512>}]} {
    %c0_i32 = arith.constant 0 : i32
    %0 = arith.cmpi eq, %arg2, %c0_i32 : i32
    %1 = arith.extui %0 : i1 to i32
    %c0_i32_0 = arith.constant 0 : i32
    %2 = arith.cmpi ne, %1, %c0_i32_0 : i32
    scf.if %2 {
      %cst_8 = arith.constant 0.000000e+00 : f32
      %9 = vector.broadcast %cst_8 : f32 to vector<64x512xf32>
      %c0_9 = arith.constant 0 : index
      %c0_10 = arith.constant 0 : index
      %10 = vector.load %arg5[%c0_9, %c0_10] : memref<64x512xf32, #tpu.memory_space<vmem>>, vector<64x512xf32>
      tpu.vector_store %arg5[%c0_9, %c0_10], %9 {strides = array<i32>} : memref<64x512xf32, #tpu.memory_space<vmem>>, vector<64x512xf32>,
    } else {
    }
    %c0 = arith.constant 0 : index
    %c0_1 = arith.constant 0 : index
    %3 = vector.load %arg5[%c0, %c0_1] : memref<64x512xf32, #tpu.memory_space<vmem>>, vector<64x512xf32>
    %c0_2 = arith.constant 0 : index
    %c0_3 = arith.constant 0 : index
    %4 = vector.load %arg3[%c0_2, %c0_3] : memref<64x256xf32, #tpu.memory_space<vmem>>, vector<64x256xf32>
    %c0_4 = arith.constant 0 : index
    %c0_5 = arith.constant 0 : index
    %5 = vector.load %arg4[%c0_4, %c0_5] : memref<256x512xf32, #tpu.memory_space<vmem>>, vector<256x512xf32>
    %cst = arith.constant dense<0.000000e+00> : vector<64x512xf32>
    %6 = tpu.matmul %4, %5, %cst {dimension_numbers = #tpu.dot_dimension_numbers<[1], [0], [0], [1], [0, 0, 1, 1], [], []>} : vector<64x256xf32>, vector<256x512xf32>, vector<64x512xf32> -> vector<64x512xf32>
    %7 = arith.addf %3, %6 : vector<64x512xf32>
    %c0_6 = arith.constant 0 : index
    %c0_7 = arith.constant 0 : index
    %8 = vector.load %arg5[%c0_6, %c0_7] : memref<64x512xf32, #tpu.memory_space<vmem>>, vector<64x512xf32>
    tpu.vector_store %arg5[%c0_6, %c0_7], %7 {strides = array<i32>} : memref<64x512xf32, #tpu.memory_space<vmem>>, vector<64x512xf32>,
    return
  }
  func.func @transform_0(%arg0: i32, %arg1: i32, %arg2: i32) -> (i32, i32) {
    %c0_i32 = arith.constant 0 : i32
    return %arg0, %arg2 : i32, i32
  }
  func.func @transform_1(%arg0: i32, %arg1: i32, %arg2: i32) -> (i32, i32) {
    %c0_i32 = arith.constant 0 : i32
    return %arg2, %arg1 : i32, i32
  }
  func.func @transform_2(%arg0: i32, %arg1: i32, %arg2: i32) -> (i32, i32) {
    %c0_i32 = arith.constant 0 : i32
    return %arg0, %arg1 : i32, i32
  }
}

</mosaic_0001>

<llo_original>
// kernel: tpu_custom_call.1
$region0: #{tpu_custom_call.1}
  #allocation0 [shape = 'u32[]', space=smem, size = 0x4, offset = 0x4, fixed_abs, tag = 'smem constant byte address 0x4 - core index']
  #allocation1 [shape = 'u32[144,128]{1,0:T(1,128)}', space=vmem, size = 0x12000, scoped, tag = 'internal scratch']
  %s0 = inlined_call_operand.hbm [shape: f32[64,256], index: 0, kind: input, shape index: {}]
  %s1 = inlined_call_operand.hbm [shape: f32[256,512], index: 1, kind: input, shape index: {}]
  %s2 = inlined_call_operand.hbm [shape: f32[64,512], index: 2, kind: output, shape index: {}]
  %s3 = sld [smem:[#allocation0]]
  $region30: #{tpu_custom_call.1} parent=0
    _
  %s5 = ssub.s32 1, %s3
  %s6 = scalar_select 0, %s5, %s3
  $region1: #{tpu_custom_call.1} parent=0
    #allocation2 [shape = 'u8[65536]{0}', space=vmem, size = 0x10000, scoped, tag = 'input window, operand 0, single buffered']
    #allocation3 [shape = 's32[1]{0}', space=sflag, size = 0x4, scoped, tag = 'scoped memory for tpu_custom_call.1']
    #allocation4 [shape = 's32[1]{0}', space=sflag, size = 0x4, scoped, tag = 'scoped memory for tpu_custom_call.1']
    #allocation5 [shape = 'u8[524288]{0}', space=vmem, size = 0x80000, scoped, tag = 'input window, operand 1, single buffered']
    #allocation6 [shape = 's32[1]{0}', space=sflag, size = 0x4, scoped, tag = 'scoped memory for tpu_custom_call.1']
    #allocation7 [shape = 'u8[131072]{0}', space=vmem, size = 0x20000, scoped, tag = 'output window, operand 0, single buffered']
    %7 = vsyncpa [#allocation3], 0
    %8 = vsyncpa [#allocation6], 0
    %9 = vsyncpa [#allocation4], 0
    // Predicated region
    $region2: #{tpu_custom_call.1} parent=1 // pred_check
      _
    $region3: #{tpu_custom_call.1} parent=1 // pred_check_branch
      %11 = sbr.rel (0) target = $region5
    $region4: #{tpu_custom_call.1} parent=1 // pred_region
      %s13 = ssub.s32 2048, 2048
      %14 = vsyncadd [#allocation3], %s13
      %s15 = sshll.u32 [#allocation2], 4
      %s16 = int_to_ptr.vmem [resolvable:$true] %s15
      %21 = dma.hbm_to_vmem [thread:$0]  %s0, 2048, %s16, [#allocation3], 256, 256, 16
    $region5: #{tpu_custom_call.1} parent=1 // pred_fallthru
      _
    // Predicated region
    $region6: #{tpu_custom_call.1} parent=1 // pred_check
      _
    $region7: #{tpu_custom_call.1} parent=1 // pred_check_branch
      %23 = sbr.rel (0) target = $region9
    $region8: #{tpu_custom_call.1} parent=1 // pred_region
      %s25 = ssub.s32 16384, 16384
      %26 = vsyncadd [#allocation6], %s25
      %s27 = sshll.u32 [#allocation5], 4
      %s28 = int_to_ptr.vmem [resolvable:$true] %s27
      %33 = dma.hbm_to_vmem [thread:$0]  %s1, 16384, %s28, [#allocation6], 512, 512, 32
    $region9: #{tpu_custom_call.1} parent=1 // pred_fallthru
      _
    // Predicated region
    $region10: #{tpu_custom_call.1} parent=1 // pred_check
      _
    $region11: #{tpu_custom_call.1} parent=1 // pred_check_branch
      %35 = sbr.rel (0) target = $region13
    $region12: #{tpu_custom_call.1} parent=1 // pred_region
      %36 = dma.done [#allocation3], 2048
    $region13: #{tpu_custom_call.1} parent=1 // pred_fallthru
      _
    // Predicated region
    $region14: #{tpu_custom_call.1} parent=1 // pred_check
      _
    $region15: #{tpu_custom_call.1} parent=1 // pred_check_branch
      %38 = sbr.rel (0) target = $region17
    $region16: #{tpu_custom_call.1} parent=1 // pred_region
      %39 = dma.done [#allocation6], 16384
    $region17: #{tpu_custom_call.1} parent=1 // pred_fallthru
      _
    %p40 = scmp.eq.s32.totalorder 0, 0
    // Predicated region
    $region18: #{tpu_custom_call.1} parent=1 // pred_check
      %p41 = pneg %p40
    $region19: #{tpu_custom_call.1} parent=1 // pred_check_branch
      %43 = sbr.rel (%p41) target = $region21
    $region20: #{tpu_custom_call.1} parent=1 // pred_region
      %44 = vst [vmem:[#allocation7] sm:$0xff] 0.0
      %45 = vst [vmem:[#allocation7 + $0x8] sm:$0xff] 0.0
      %46 = vst [vmem:[#allocation7 + $0x10] sm:$0xff] 0.0
      %47 = vst [vmem:[#allocation7 + $0x18] sm:$0xff] 0.0
      %48 = vst [vmem:[#allocation7 + $0x20] sm:$0xff] 0.0
      %49 = vst [vmem:[#allocation7 + $0x28] sm:$0xff] 0.0
      %50 = vst [vmem:[#allocation7 + $0x30] sm:$0xff] 0.0
      %51 = vst [vmem:[#allocation7 + $0x38] sm:$0xff] 0.0
      %52 = vst [vmem:[#allocation7 + $0x40] sm:$0xff] 0.0
      %53 = vst [vmem:[#allocation7 + $0x48] sm:$0xff] 0.0
      %54 = vst [vmem:[#allocation7 + $0x50] sm:$0xff] 0.0
      %55 = vst [vmem:[#allocation7 + $0x58] sm:$0xff] 0.0
      %56 = vst [vmem:[#allocation7 + $0x60] sm:$0xff] 0.0
      %57 = vst [vmem:[#allocation7 + $0x68] sm:$0xff] 0.0
      %58 = vst [vmem:[#allocation7 + $0x70] sm:$0xff] 0.0
      %59 = vst [vmem:[#allocation7 + $0x78] sm:$0xff] 0.0
      %60 = vst [vmem:[#allocation7 + $0x80] sm:$0xff] 0.0
      %61 = vst [vmem:[#allocation7 + $0x88] sm:$0xff] 0.0
      %62 = vst [vmem:[#allocation7 + $0x90] sm:$0xff] 0.0
      %63 = vst [vmem:[#allocation7 + $0x98] sm:$0xff] 0.0
      %64 = vst [vmem:[#allocation7 + $0xa0] sm:$0xff] 0.0
      %65 = vst [vmem:[#allocation7 + $0xa8] sm:$0xff] 0.0
      %66 = vst [vmem:[#allocation7 + $0xb0] sm:$0xff] 0.0
      %67 = vst [vmem:[#allocation7 + $0xb8] sm:$0xff] 0.0
      %68 = vst [vmem:[#allocation7 + $0xc0] sm:$0xff] 0.0
      %69 = vst [vmem:[#allocation7 + $0xc8] sm:$0xff] 0.0
      %70 = vst [vmem:[#allocation7 + $0xd0] sm:$0xff] 0.0
      %71 = vst [vmem:[#allocation7 + $0xd8] sm:$0xff] 0.0
      %72 = vst [vmem:[#allocation7 + $0xe0] sm:$0xff] 0.0
      %73 = vst [vmem:[#allocation7 + $0xe8] sm:$0xff] 0.0
      %74 = vst [vmem:[#allocation7 + $0xf0] sm:$0xff] 0.0
      %75 = vst [vmem:[#allocation7 + $0xf8] sm:$0xff] 0.0
    $region21: #{tpu_custom_call.1} parent=1 // pred_fallthru
      _
    %v76 = vld [vmem:[#allocation7] sm:$0xff]
    %v77 = vld [vmem:[#allocation7 + $0x8] sm:$0xff]
    %v78 = vld [vmem:[#allocation7 + $0x10] sm:$0xff]
    %v79 = vld [vmem:[#allocation7 + $0x18] sm:$0xff]
    %v80 = vld [vmem:[#allocation7 + $0x20] sm:$0xff]
    %v81 = vld [vmem:[#allocation7 + $0x28] sm:$0xff]
    %v82 = vld [vmem:[#allocation7 + $0x30] sm:$0xff]
    %v83 = vld [vmem:[#allocation7 + $0x38] sm:$0xff]
    %v84 = vld [vmem:[#allocation7 + $0x40] sm:$0xff]
    %v85 = vld [vmem:[#allocation7 + $0x48] sm:$0xff]
    %v86 = vld [vmem:[#allocation7 + $0x50] sm:$0xff]
    %v87 = vld [vmem:[#allocation7 + $0x58] sm:$0xff]
    %v88 = vld [vmem:[#allocation7 + $0x60] sm:$0xff]
    %v89 = vld [vmem:[#allocation7 + $0x68] sm:$0xff]
    %v90 = vld [vmem:[#allocation7 + $0x70] sm:$0xff]
    %v91 = vld [vmem:[#allocation7 + $0x78] sm:$0xff]
    %v92 = vld [vmem:[#allocation7 + $0x80] sm:$0xff]
    %v93 = vld [vmem:[#allocation7 + $0x88] sm:$0xff]
    %v94 = vld [vmem:[#allocation7 + $0x90] sm:$0xff]
    %v95 = vld [vmem:[#allocation7 + $0x98] sm:$0xff]
    %v96 = vld [vmem:[#allocation7 + $0xa0] sm:$0xff]
    %v97 = vld [vmem:[#allocation7 + $0xa8] sm:$0xff]
    %v98 = vld [vmem:[#allocation7 + $0xb0] sm:$0xff]
    %v99 = vld [vmem:[#allocation7 + $0xb8] sm:$0xff]
    %v100 = vld [vmem:[#allocation7 + $0xc0] sm:$0xff]
    %v101 = vld [vmem:[#allocation7 + $0xc8] sm:$0xff]
    %v102 = vld [vmem:[#allocation7 + $0xd0] sm:$0xff]
    %v103 = vld [vmem:[#allocation7 + $0xd8] sm:$0xff]
    %v104 = vld [vmem:[#allocation7 + $0xe0] sm:$0xff]
    %v105 = vld [vmem:[#allocation7 + $0xe8] sm:$0xff]
    %v106 = vld [vmem:[#allocation7 + $0xf0] sm:$0xff]
    %v107 = vld [vmem:[#allocation7 + $0xf8] sm:$0xff]
    %v108 = vld [vmem:[#allocation2] sm:$0xff]
    %v109 = vld [vmem:[#allocation2 + $0x8] sm:$0xff]
    %v110 = vld [vmem:[#allocation2 + $0x10] sm:$0xff]
    %v111 = vld [vmem:[#allocation2 + $0x18] sm:$0xff]
    %v112 = vld [vmem:[#allocation2 + $0x20] sm:$0xff]
    %v113 = vld [vmem:[#allocation2 + $0x28] sm:$0xff]
    %v114 = vld [vmem:[#allocation2 + $0x30] sm:$0xff]
    %v115 = vld [vmem:[#allocation2 + $0x38] sm:$0xff]
    %v116 = vld [vmem:[#allocation2 + $0x40] sm:$0xff]
    %v117 = vld [vmem:[#allocation2 + $0x48] sm:$0xff]
    %v118 = vld [vmem:[#allocation2 + $0x50] sm:$0xff]
    %v119 = vld [vmem:[#allocation2 + $0x58] sm:$0xff]
    %v120 = vld [vmem:[#allocation2 + $0x60] sm:$0xff]
    %v121 = vld [vmem:[#allocation2 + $0x68] sm:$0xff]
    %v122 = vld [vmem:[#allocation2 + $0x70] sm:$0xff]
    %v123 = vld [vmem:[#allocation2 + $0x78] sm:$0xff]
    %v124 = vld [vmem:[#allocation5] sm:$0xff]
    %v125 = vld [vmem:[#allocation5 + $0x8] sm:$0xff]
    %v126 = vld [vmem:[#allocation5 + $0x10] sm:$0xff]
    %v127 = vld [vmem:[#allocation5 + $0x18] sm:$0xff]
    %v128 = vld [vmem:[#allocation5 + $0x20] sm:$0xff]
    %v129 = vld [vmem:[#allocation5 + $0x28] sm:$0xff]
    %v130 = vld [vmem:[#allocation5 + $0x30] sm:$0xff]
    %v131 = vld [vmem:[#allocation5 + $0x38] sm:$0xff]
    %v132 = vld [vmem:[#allocation5 + $0x40] sm:$0xff]
    %v133 = vld [vmem:[#allocation5 + $0x48] sm:$0xff]
    %v134 = vld [vmem:[#allocation5 + $0x50] sm:$0xff]
    %v135 = vld [vmem:[#allocation5 + $0x58] sm:$0xff]
    %v136 = vld [vmem:[#allocation5 + $0x60] sm:$0xff]
    %v137 = vld [vmem:[#allocation5 + $0x68] sm:$0xff]
    %v138 = vld [vmem:[#allocation5 + $0x70] sm:$0xff]
    %v139 = vld [vmem:[#allocation5 + $0x78] sm:$0xff]
    %v140 = vld [vmem:[#allocation5 + $0x80] sm:$0xff]
    %v141 = vld [vmem:[#allocation5 + $0x88] sm:$0xff]
    %v142 = vld [vmem:[#allocation5 + $0x90] sm:$0xff]
    %v143 = vld [vmem:[#allocation5 + $0x98] sm:$0xff]
    %v144 = vld [vmem:[#allocation5 + $0xa0] sm:$0xff]
    %v145 = vld [vmem:[#allocation5 + $0xa8] sm:$0xff]
    %v146 = vld [vmem:[#allocation5 + $0xb0] sm:$0xff]
    %v147 = vld [vmem:[#allocation5 + $0xb8] sm:$0xff]
    %v148 = vld [vmem:[#allocation5 + $0xc0] sm:$0xff]
    %v149 = vld [vmem:[#allocation5 + $0xc8] sm:$0xff]
    %v150 = vld [vmem:[#allocation5 + $0xd0] sm:$0xff]
    %v151 = vld [vmem:[#allocation5 + $0xd8] sm:$0xff]
    %v152 = vld [vmem:[#allocation5 + $0xe0] sm:$0xff]
    %v153 = vld [vmem:[#allocation5 + $0xe8] sm:$0xff]
    %v154 = vld [vmem:[#allocation5 + $0xf0] sm:$0xff]
    %v155 = vld [vmem:[#allocation5 + $0xf8] sm:$0xff]
    %v156 = vld [vmem:[#allocation5 + $0x100] sm:$0xff]
    %v157 = vld [vmem:[#allocation5 + $0x108] sm:$0xff]
    %v158 = vld [vmem:[#allocation5 + $0x110] sm:$0xff]
    %v159 = vld [vmem:[#allocation5 + $0x118] sm:$0xff]
    %v160 = vld [vmem:[#allocation5 + $0x120] sm:$0xff]
    %v161 = vld [vmem:[#allocation5 + $0x128] sm:$0xff]
    %v162 = vld [vmem:[#allocation5 + $0x130] sm:$0xff]
    %v163 = vld [vmem:[#allocation5 + $0x138] sm:$0xff]
    %v164 = vld [vmem:[#allocation5 + $0x140] sm:$0xff]
    %v165 = vld [vmem:[#allocation5 + $0x148] sm:$0xff]
    %v166 = vld [vmem:[#allocation5 + $0x150] sm:$0xff]
    %v167 = vld [vmem:[#allocation5 + $0x158] sm:$0xff]
    %v168 = vld [vmem:[#allocation5 + $0x160] sm:$0xff]
    %v169 = vld [vmem:[#allocation5 + $0x168] sm:$0xff]
    %v170 = vld [vmem:[#allocation5 + $0x170] sm:$0xff]
    %v171 = vld [vmem:[#allocation5 + $0x178] sm:$0xff]
    %v172 = vld [vmem:[#allocation5 + $0x180] sm:$0xff]
    %v173 = vld [vmem:[#allocation5 + $0x188] sm:$0xff]
    %v174 = vld [vmem:[#allocation5 + $0x190] sm:$0xff]
    %v175 = vld [vmem:[#allocation5 + $0x198] sm:$0xff]
    %v176 = vld [vmem:[#allocation5 + $0x1a0] sm:$0xff]
    %v177 = vld [vmem:[#allocation5 + $0x1a8] sm:$0xff]
    %v178 = vld [vmem:[#allocation5 + $0x1b0] sm:$0xff]
    %v179 = vld [vmem:[#allocation5 + $0x1b8] sm:$0xff]
    %v180 = vld [vmem:[#allocation5 + $0x1c0] sm:$0xff]
    %v181 = vld [vmem:[#allocation5 + $0x1c8] sm:$0xff]
    %v182 = vld [vmem:[#allocation5 + $0x1d0] sm:$0xff]
    %v183 = vld [vmem:[#allocation5 + $0x1d8] sm:$0xff]
    %v184 = vld [vmem:[#allocation5 + $0x1e0] sm:$0xff]
    %v185 = vld [vmem:[#allocation5 + $0x1e8] sm:$0xff]
    %v186 = vld [vmem:[#allocation5 + $0x1f0] sm:$0xff]
    %v187 = vld [vmem:[#allocation5 + $0x1f8] sm:$0xff]
    %v188 = vld [vmem:[#allocation5 + $0x200] sm:$0xff]
    %v189 = vld [vmem:[#allocation5 + $0x208] sm:$0xff]
    %v190 = vld [vmem:[#allocation5 + $0x210] sm:$0xff]
    %v191 = vld [vmem:[#allocation5 + $0x218] sm:$0xff]
    %v192 = vld [vmem:[#allocation5 + $0x220] sm:$0xff]
    %v193 = vld [vmem:[#allocation5 + $0x228] sm:$0xff]
    %v194 = vld [vmem:[#allocation5 + $0x230] sm:$0xff]
    %v195 = vld [vmem:[#allocation5 + $0x238] sm:$0xff]
    %v196 = vld [vmem:[#allocation5 + $0x240] sm:$0xff]
    %v197 = vld [vmem:[#allocation5 + $0x248] sm:$0xff]
    %v198 = vld [vmem:[#allocation5 + $0x250] sm:$0xff]
    %v199 = vld [vmem:[#allocation5 + $0x258] sm:$0xff]
    %v200 = vld [vmem:[#allocation5 + $0x260] sm:$0xff]
    %v201 = vld [vmem:[#allocation5 + $0x268] sm:$0xff]
    %v202 = vld [vmem:[#allocation5 + $0x270] sm:$0xff]
    %v203 = vld [vmem:[#allocation5 + $0x278] sm:$0xff]
    %v204 = vld [vmem:[#allocation5 + $0x280] sm:$0xff]
    %v205 = vld [vmem:[#allocation5 + $0x288] sm:$0xff]
    %v206 = vld [vmem:[#allocation5 + $0x290] sm:$0xff]
    %v207 = vld [vmem:[#allocation5 + $0x298] sm:$0xff]
    %v208 = vld [vmem:[#allocation5 + $0x2a0] sm:$0xff]
    %v209 = vld [vmem:[#allocation5 + $0x2a8] sm:$0xff]
    %v210 = vld [vmem:[#allocation5 + $0x2b0] sm:$0xff]
    %v211 = vld [vmem:[#allocation5 + $0x2b8] sm:$0xff]
    %v212 = vld [vmem:[#allocation5 + $0x2c0] sm:$0xff]
    %v213 = vld [vmem:[#allocation5 + $0x2c8] sm:$0xff]
    %v214 = vld [vmem:[#allocation5 + $0x2d0] sm:$0xff]
    %v215 = vld [vmem:[#allocation5 + $0x2d8] sm:$0xff]
    %v216 = vld [vmem:[#allocation5 + $0x2e0] sm:$0xff]
    %v217 = vld [vmem:[#allocation5 + $0x2e8] sm:$0xff]
    %v218 = vld [vmem:[#allocation5 + $0x2f0] sm:$0xff]
    %v219 = vld [vmem:[#allocation5 + $0x2f8] sm:$0xff]
    %v220 = vld [vmem:[#allocation5 + $0x300] sm:$0xff]
    %v221 = vld [vmem:[#allocation5 + $0x308] sm:$0xff]
    %v222 = vld [vmem:[#allocation5 + $0x310] sm:$0xff]
    %v223 = vld [vmem:[#allocation5 + $0x318] sm:$0xff]
    %v224 = vld [vmem:[#allocation5 + $0x320] sm:$0xff]
    %v225 = vld [vmem:[#allocation5 + $0x328] sm:$0xff]
    %v226 = vld [vmem:[#allocation5 + $0x330] sm:$0xff]
    %v227 = vld [vmem:[#allocation5 + $0x338] sm:$0xff]
    %v228 = vld [vmem:[#allocation5 + $0x340] sm:$0xff]
    %v229 = vld [vmem:[#allocation5 + $0x348] sm:$0xff]
    %v230 = vld [vmem:[#allocation5 + $0x350] sm:$0xff]
    %v231 = vld [vmem:[#allocation5 + $0x358] sm:$0xff]
    %v232 = vld [vmem:[#allocation5 + $0x360] sm:$0xff]
    %v233 = vld [vmem:[#allocation5 + $0x368] sm:$0xff]
    %v234 = vld [vmem:[#allocation5 + $0x370] sm:$0xff]
    %v235 = vld [vmem:[#allocation5 + $0x378] sm:$0xff]
    %v236 = vld [vmem:[#allocation5 + $0x380] sm:$0xff]
    %v237 = vld [vmem:[#allocation5 + $0x388] sm:$0xff]
    %v238 = vld [vmem:[#allocation5 + $0x390] sm:$0xff]
    %v239 = vld [vmem:[#allocation5 + $0x398] sm:$0xff]
    %v240 = vld [vmem:[#allocation5 + $0x3a0] sm:$0xff]
    %v241 = vld [vmem:[#allocation5 + $0x3a8] sm:$0xff]
    %v242 = vld [vmem:[#allocation5 + $0x3b0] sm:$0xff]
    %v243 = vld [vmem:[#allocation5 + $0x3b8] sm:$0xff]
    %v244 = vld [vmem:[#allocation5 + $0x3c0] sm:$0xff]
    %v245 = vld [vmem:[#allocation5 + $0x3c8] sm:$0xff]
    %v246 = vld [vmem:[#allocation5 + $0x3d0] sm:$0xff]
    %v247 = vld [vmem:[#allocation5 + $0x3d8] sm:$0xff]
    %v248 = vld [vmem:[#allocation5 + $0x3e0] sm:$0xff]
    %v249 = vld [vmem:[#allocation5 + $0x3e8] sm:$0xff]
    %v250 = vld [vmem:[#allocation5 + $0x3f0] sm:$0xff]
    %v251 = vld [vmem:[#allocation5 + $0x3f8] sm:$0xff]
    %252 = vmatprep.subr.mxu0 %v185
    %253 = vmatpush1.msra.mxu0 %v184
    %254 = vmatprep.subr.mxu0 %v181
    %255 = vmatpush1.msra.mxu0 %v180
    %256 = vmatprep.subr.mxu0 %v177
    %257 = vmatpush1.msra.mxu0 %v176
    %258 = vmatprep.subr.mxu0 %v173
    %259 = vmatpush1.msra.mxu0 %v172
    %260 = vmatprep.subr.mxu0 %v169
    %261 = vmatpush1.msra.mxu0 %v168
    %262 = vmatprep.subr.mxu0 %v165
    %263 = vmatpush1.msra.mxu0 %v164
    %264 = vmatprep.subr.mxu0 %v161
    %265 = vmatpush1.msra.mxu0 %v160
    %266 = vmatprep.subr.mxu0 %v157
    %267 = vmatpush1.msra.mxu0 %v156
    %268 = vmatprep.subr.mxu0 %v153
    %269 = vmatpush1.msra.mxu0 %v152
    %270 = vmatprep.subr.mxu0 %v149
    %271 = vmatpush1.msra.mxu0 %v148
    %272 = vmatprep.subr.mxu0 %v145
    %273 = vmatpush1.msra.mxu0 %v144
    %274 = vmatprep.subr.mxu0 %v141
    %275 = vmatpush1.msra.mxu0 %v140
    %276 = vmatprep.subr.mxu0 %v137
    %277 = vmatpush1.msra.mxu0 %v136
    %278 = vmatprep.subr.mxu0 %v133
    %279 = vmatpush1.msra.mxu0 %v132
    %280 = vmatprep.subr.mxu0 %v129
    %281 = vmatpush1.msra.mxu0 %v128
    %282 = vmatprep.subr.mxu0 %v125
    %283 = vmatpush1.msra.mxu0 %v124
    %284 = vmatprep.subr.mxu0 %v249
    %285 = vmatpush2.msra.mxu0 %v248
    %286 = vmatprep.subr.mxu0 %v245
    %287 = vmatpush2.msra.mxu0 %v244
    %288 = vmatprep.subr.mxu0 %v241
    %289 = vmatpush2.msra.mxu0 %v240
    %290 = vmatprep.subr.mxu0 %v237
    %291 = vmatpush2.msra.mxu0 %v236
    %292 = vmatprep.subr.mxu0 %v233
    %293 = vmatpush2.msra.mxu0 %v232
    %294 = vmatprep.subr.mxu0 %v229
    %295 = vmatpush2.msra.mxu0 %v228
    %296 = vmatprep.subr.mxu0 %v225
    %297 = vmatpush2.msra.mxu0 %v224
    %298 = vmatprep.subr.mxu0 %v221
    %299 = vmatpush2.msra.mxu0 %v220
    %300 = vmatprep.subr.mxu0 %v217
    %301 = vmatpush2.msra.mxu0 %v216
    %302 = vmatprep.subr.mxu0 %v213
    %303 = vmatpush2.msra.mxu0 %v212
    %304 = vmatprep.subr.mxu0 %v209
    %305 = vmatpush2.msra.mxu0 %v208
    %306 = vmatprep.subr.mxu0 %v205
    %307 = vmatpush2.msra.mxu0 %v204
    %308 = vmatprep.subr.mxu0 %v201
    %309 = vmatpush2.msra.mxu0 %v200
    %310 = vmatprep.subr.mxu0 %v197
    %311 = vmatpush2.msra.mxu0 %v196
    %312 = vmatprep.subr.mxu0 %v193
    %313 = vmatpush2.msra.mxu0 %v192
    %314 = vmatprep.subr.mxu0 %v189
    %315 = vmatpush2.msra.mxu0 %v188
    %316 = vmatprep.mubr.f32.mxu0 %v109
    %317 = vmatmul.mubr.f32.gmra.mxu0 %v108
    %v318 = vpop.f32.mrf.mxu0
    %v319 = vadd.f32 0.0, %v318
    %v320 = vpop.f32.mrf.mxu0
    %v321 = vadd.f32 0.0, %v320
    %322 = vmatprep.mubr.f32.mxu0 %v111
    %323 = vmatmul.mubr.f32.gmra.mxu0 %v110
    %v324 = vpop.f32.mrf.mxu0
    %v325 = vadd.f32 0.0, %v324
    %v326 = vpop.f32.mrf.mxu0
    %v327 = vadd.f32 0.0, %v326
    %328 = vmatprep.mubr.f32.mxu0 %v113
    %329 = vmatmul.mubr.f32.gmra.mxu0 %v112
    %v330 = vpop.f32.mrf.mxu0
    %v331 = vadd.f32 0.0, %v330
    %v332 = vpop.f32.mrf.mxu0
    %v333 = vadd.f32 0.0, %v332
    %334 = vmatprep.mubr.f32.mxu0 %v115
    %335 = vmatmul.mubr.f32.gmra.mxu0 %v114
    %v336 = vpop.f32.mrf.mxu0
    %v337 = vadd.f32 0.0, %v336
    %v338 = vpop.f32.mrf.mxu0
    %v339 = vadd.f32 0.0, %v338
    %340 = vmatprep.mubr.f32.mxu0 %v117
    %341 = vmatmul.mubr.f32.gmra.mxu0 %v116
    %v342 = vpop.f32.mrf.mxu0
    %v343 = vadd.f32 0.0, %v342
    %v344 = vpop.f32.mrf.mxu0
    %v345 = vadd.f32 0.0, %v344
    %346 = vmatprep.mubr.f32.mxu0 %v119
    %347 = vmatmul.mubr.f32.gmra.mxu0 %v118
    %v348 = vpop.f32.mrf.mxu0
    %v349 = vadd.f32 0.0, %v348
    %v350 = vpop.f32.mrf.mxu0
    %v351 = vadd.f32 0.0, %v350
    %352 = vmatprep.mubr.f32.mxu0 %v121
    %353 = vmatmul.mubr.f32.gmra.mxu0 %v120
    %v354 = vpop.f32.mrf.mxu0
    %v355 = vadd.f32 0.0, %v354
    %v356 = vpop.f32.mrf.mxu0
    %v357 = vadd.f32 0.0, %v356
    %358 = vmatprep.mubr.f32.mxu0 %v123
    %359 = vmatmul.mubr.f32.gmra.mxu0 %v122
    %v360 = vpop.f32.mrf.mxu0
    %v361 = vadd.f32 0.0, %v360
    %v362 = vpop.f32.mrf.mxu0
    %v363 = vadd.f32 0.0, %v362
    %364 = vdwg.mxu0
    %365 = vmatprep.subr.mxu0 %v187
    %366 = vmatpush1.msra.mxu0 %v186
    %367 = vmatprep.subr.mxu0 %v183
    %368 = vmatpush1.msra.mxu0 %v182
    %369 = vmatprep.subr.mxu0 %v179
    %370 = vmatpush1.msra.mxu0 %v178
    %371 = vmatprep.subr.mxu0 %v175
    %372 = vmatpush1.msra.mxu0 %v174
    %373 = vmatprep.subr.mxu0 %v171
    %374 = vmatpush1.msra.mxu0 %v170
    %375 = vmatprep.subr.mxu0 %v167
    %376 = vmatpush1.msra.mxu0 %v166
    %377 = vmatprep.subr.mxu0 %v163
    %378 = vmatpush1.msra.mxu0 %v162
    %379 = vmatprep.subr.mxu0 %v159
    %380 = vmatpush1.msra.mxu0 %v158
    %381 = vmatprep.subr.mxu0 %v155
    %382 = vmatpush1.msra.mxu0 %v154
    %383 = vmatprep.subr.mxu0 %v151
    %384 = vmatpush1.msra.mxu0 %v150
    %385 = vmatprep.subr.mxu0 %v147
    %386 = vmatpush1.msra.mxu0 %v146
    %387 = vmatprep.subr.mxu0 %v143
    %388 = vmatpush1.msra.mxu0 %v142
    %389 = vmatprep.subr.mxu0 %v139
    %390 = vmatpush1.msra.mxu0 %v138
    %391 = vmatprep.subr.mxu0 %v135
    %392 = vmatpush1.msra.mxu0 %v134
    %393 = vmatprep.subr.mxu0 %v131
    %394 = vmatpush1.msra.mxu0 %v130
    %395 = vmatprep.subr.mxu0 %v127
    %396 = vmatpush1.msra.mxu0 %v126
    %397 = vmatprep.subr.mxu0 %v251
    %398 = vmatpush2.msra.mxu0 %v250
    %399 = vmatprep.subr.mxu0 %v247
    %400 = vmatpush2.msra.mxu0 %v246
    %401 = vmatprep.subr.mxu0 %v243
    %402 = vmatpush2.msra.mxu0 %v242
    %403 = vmatprep.subr.mxu0 %v239
    %404 = vmatpush2.msra.mxu0 %v238
    %405 = vmatprep.subr.mxu0 %v235
    %406 = vmatpush2.msra.mxu0 %v234
    %407 = vmatprep.subr.mxu0 %v231
    %408 = vmatpush2.msra.mxu0 %v230
    %409 = vmatprep.subr.mxu0 %v227
    %410 = vmatpush2.msra.mxu0 %v226
    %411 = vmatprep.subr.mxu0 %v223
    %412 = vmatpush2.msra.mxu0 %v222
    %413 = vmatprep.subr.mxu0 %v219
    %414 = vmatpush2.msra.mxu0 %v218
    %415 = vmatprep.subr.mxu0 %v215
    %416 = vmatpush2.msra.mxu0 %v214
    %417 = vmatprep.subr.mxu0 %v211
    %418 = vmatpush2.msra.mxu0 %v210
    %419 = vmatprep.subr.mxu0 %v207
    %420 = vmatpush2.msra.mxu0 %v206
    %421 = vmatprep.subr.mxu0 %v203
    %422 = vmatpush2.msra.mxu0 %v202
    %423 = vmatprep.subr.mxu0 %v199
    %424 = vmatpush2.msra.mxu0 %v198
    %425 = vmatprep.subr.mxu0 %v195
    %426 = vmatpush2.msra.mxu0 %v194
    %427 = vmatprep.subr.mxu0 %v191
    %428 = vmatpush2.msra.mxu0 %v190
    %429 = vmatprep.mubr.f32.mxu0 %v109
    %430 = vmatmul.mubr.f32.gmra.mxu0 %v108
    %v431 = vpop.f32.mrf.mxu0
    %v432 = vadd.f32 0.0, %v431
    %v433 = vpop.f32.mrf.mxu0
    %v434 = vadd.f32 0.0, %v433
    %435 = vmatprep.mubr.f32.mxu0 %v111
    %436 = vmatmul.mubr.f32.gmra.mxu0 %v110
    %v437 = vpop.f32.mrf.mxu0
    %v438 = vadd.f32 0.0, %v437
    %v439 = vpop.f32.mrf.mxu0
    %v440 = vadd.f32 0.0, %v439
    %441 = vmatprep.mubr.f32.mxu0 %v113
    %442 = vmatmul.mubr.f32.gmra.mxu0 %v112
    %v443 = vpop.f32.mrf.mxu0
    %v444 = vadd.f32 0.0, %v443
    %v445 = vpop.f32.mrf.mxu0
    %v446 = vadd.f32 0.0, %v445
    %447 = vmatprep.mubr.f32.mxu0 %v115
    %448 = vmatmul.mubr.f32.gmra.mxu0 %v114
    %v449 = vpop.f32.mrf.mxu0
    %v450 = vadd.f32 0.0, %v449
    %v451 = vpop.f32.mrf.mxu0
    %v452 = vadd.f32 0.0, %v451
    %453 = vmatprep.mubr.f32.mxu0 %v117
    %454 = vmatmul.mubr.f32.gmra.mxu0 %v116
    %v455 = vpop.f32.mrf.mxu0
    %v456 = vadd.f32 0.0, %v455
    %v457 = vpop.f32.mrf.mxu0
    %v458 = vadd.f32 0.0, %v457
    %459 = vmatprep.mubr.f32.mxu0 %v119
    %460 = vmatmul.mubr.f32.gmra.mxu0 %v118
    %v461 = vpop.f32.mrf.mxu0
    %v462 = vadd.f32 0.0, %v461
    %v463 = vpop.f32.mrf.mxu0
    %v464 = vadd.f32 0.0, %v463
    %465 = vmatprep.mubr.f32.mxu0 %v121
    %466 = vmatmul.mubr.f32.gmra.mxu0 %v120
    %v467 = vpop.f32.mrf.mxu0
    %v468 = vadd.f32 0.0, %v467
    %v469 = vpop.f32.mrf.mxu0
    %v470 = vadd.f32 0.0, %v469
    %471 = vmatprep.mubr.f32.mxu0 %v123
    %472 = vmatmul.mubr.f32.gmra.mxu0 %v122
    %v473 = vpop.f32.mrf.mxu0
    %v474 = vadd.f32 0.0, %v473
    %v475 = vpop.f32.mrf.mxu0
    %v476 = vadd.f32 0.0, %v475
    %477 = vdwg.mxu0
    %v478 = vadd.f32 %v76, %v319
    %v479 = vadd.f32 %v77, %v321
    %v480 = vadd.f32 %v78, %v432
    %v481 = vadd.f32 %v79, %v434
    %v482 = vadd.f32 %v80, %v325
    %v483 = vadd.f32 %v81, %v327
    %v484 = vadd.f32 %v82, %v438
    %v485 = vadd.f32 %v83, %v440
    %v486 = vadd.f32 %v84, %v331
    %v487 = vadd.f32 %v85, %v333
    %v488 = vadd.f32 %v86, %v444
    %v489 = vadd.f32 %v87, %v446
    %v490 = vadd.f32 %v88, %v337
    %v491 = vadd.f32 %v89, %v339
    %v492 = vadd.f32 %v90, %v450
    %v493 = vadd.f32 %v91, %v452
    %v494 = vadd.f32 %v92, %v343
    %v495 = vadd.f32 %v93, %v345
    %v496 = vadd.f32 %v94, %v456
    %v497 = vadd.f32 %v95, %v458
    %v498 = vadd.f32 %v96, %v349
    %v499 = vadd.f32 %v97, %v351
    %v500 = vadd.f32 %v98, %v462
    %v501 = vadd.f32 %v99, %v464
    %v502 = vadd.f32 %v100, %v355
    %v503 = vadd.f32 %v101, %v357
    %v504 = vadd.f32 %v102, %v468
    %v505 = vadd.f32 %v103, %v470
    %v506 = vadd.f32 %v104, %v361
    %v507 = vadd.f32 %v105, %v363
    %v508 = vadd.f32 %v106, %v474
    %v509 = vadd.f32 %v107, %v476
    %510 = vst [vmem:[#allocation7] sm:$0xff] %v478
    %511 = vst [vmem:[#allocation7 + $0x8] sm:$0xff] %v479
    %512 = vst [vmem:[#allocation7 + $0x10] sm:$0xff] %v480
    %513 = vst [vmem:[#allocation7 + $0x18] sm:$0xff] %v481
    %514 = vst [vmem:[#allocation7 + $0x20] sm:$0xff] %v482
    %515 = vst [vmem:[#allocation7 + $0x28] sm:$0xff] %v483
    %516 = vst [vmem:[#allocation7 + $0x30] sm:$0xff] %v484
    %517 = vst [vmem:[#allocation7 + $0x38] sm:$0xff] %v485
    %518 = vst [vmem:[#allocation7 + $0x40] sm:$0xff] %v486
    %519 = vst [vmem:[#allocation7 + $0x48] sm:$0xff] %v487
    %520 = vst [vmem:[#allocation7 + $0x50] sm:$0xff] %v488
    %521 = vst [vmem:[#allocation7 + $0x58] sm:$0xff] %v489
    %522 = vst [vmem:[#allocation7 + $0x60] sm:$0xff] %v490
    %523 = vst [vmem:[#allocation7 + $0x68] sm:$0xff] %v491
    %524 = vst [vmem:[#allocation7 + $0x70] sm:$0xff] %v492
    %525 = vst [vmem:[#allocation7 + $0x78] sm:$0xff] %v493
    %526 = vst [vmem:[#allocation7 + $0x80] sm:$0xff] %v494
    %527 = vst [vmem:[#allocation7 + $0x88] sm:$0xff] %v495
    %528 = vst [vmem:[#allocation7 + $0x90] sm:$0xff] %v496
    %529 = vst [vmem:[#allocation7 + $0x98] sm:$0xff] %v497
    %530 = vst [vmem:[#allocation7 + $0xa0] sm:$0xff] %v498
    %531 = vst [vmem:[#allocation7 + $0xa8] sm:$0xff] %v499
    %532 = vst [vmem:[#allocation7 + $0xb0] sm:$0xff] %v500
    %533 = vst [vmem:[#allocation7 + $0xb8] sm:$0xff] %v501
    %534 = vst [vmem:[#allocation7 + $0xc0] sm:$0xff] %v502
    %535 = vst [vmem:[#allocation7 + $0xc8] sm:$0xff] %v503
    %536 = vst [vmem:[#allocation7 + $0xd0] sm:$0xff] %v504
    %537 = vst [vmem:[#allocation7 + $0xd8] sm:$0xff] %v505
    %538 = vst [vmem:[#allocation7 + $0xe0] sm:$0xff] %v506
    %539 = vst [vmem:[#allocation7 + $0xe8] sm:$0xff] %v507
    %540 = vst [vmem:[#allocation7 + $0xf0] sm:$0xff] %v508
    %541 = vst [vmem:[#allocation7 + $0xf8] sm:$0xff] %v509
    // Predicated region
    $region22: #{tpu_custom_call.1} parent=1 // pred_check
      _
    $region23: #{tpu_custom_call.1} parent=1 // pred_check_branch
      %543 = sbr.rel (0) target = $region25
    $region24: #{tpu_custom_call.1} parent=1 // pred_region
      %s545 = ssub.s32 4096, 4096
      %546 = vsyncadd [#allocation4], %s545
      %s547 = sshll.u32 [#allocation7], 4
      %s548 = int_to_ptr.vmem [resolvable:$true] %s547
      %553 = dma.vmem_to_hbm [thread:$0]  %s548, 4096, %s2, [#allocation4], 512, 512, 32
    $region25: #{tpu_custom_call.1} parent=1 // pred_fallthru
      _
    // Predicated region
    $region26: #{tpu_custom_call.1} parent=1 // pred_check
      _
    $region27: #{tpu_custom_call.1} parent=1 // pred_check_branch
      %555 = sbr.rel (0) target = $region29
    $region28: #{tpu_custom_call.1} parent=1 // pred_region
      %556 = dma.done [#allocation4], 4096
    $region29: #{tpu_custom_call.1} parent=1 // pred_fallthru
      _
    %557 = vsyncpa [#allocation3], 1
    %558 = vsyncpa [#allocation6], 1
    %559 = vsyncpa [#allocation4], 1

</llo_original>
